<compile_context>
chip_gen: v7x
topology: tpu7x:2x2x1
jax: 0.10.0
libtpu: 0.0.40
codegen_flags: <defaults>
</compile_context>

<pallas_src>
import numpy as np
import jax
import jax.numpy as jnp
from jax import lax
from jax.experimental import pallas as pl
from jax.experimental.pallas import tpu as pltpu

LANE = 128


def _round_up(n, m):
    return ((n + m - 1) // m) * m


# ---------------------------------------------------------------------------
# Fused kernel: image-LSTM init step + full greedy decode loop.
# ---------------------------------------------------------------------------
def _make_decode_kernel(nlayers, ntoken, nseq, start_tok):
    def kernel(*refs):
        img_ref = refs[0]                              # (bt, nimg_pad) f32
        enc_ref = refs[1]                              # (ntok_pad, nembed_pad)
        dec_ref = refs[2]                              # (S, ntok_pad)
        im_w = refs[3:3 + nlayers]                     # (din_pad, S) per layer
        word_w = refs[3 + nlayers:3 + 2 * nlayers]     # (din_pad + S, S) per layer
        tok_ref = refs[3 + 2 * nlayers]                # (nseq, bt, 1) int32 out

        bt = img_ref.shape[0]
        S = im_w[0].shape[1]                           # 4 * Hq, multiple of 128
        Hq = S // 4
        ntok_pad = enc_ref.shape[0]

        # Loop-invariant constants, hoisted (JAX does not CSE broadcast_in_dim).
        lane_ids = lax.broadcasted_iota(jnp.int32, (bt, ntok_pad), 1)
        vocab_ok = (lane_ids < ntoken) if ntok_pad != ntoken else None

        def lstm_cell(pre, c_prev):
            # pre: (bt, S) packed pre-activations [i | f | g | o]; pltpu.roll
            # aligns each gate block with the state lanes [0, nhidden).
            i_g = jax.nn.sigmoid(pre)
            f_g = jax.nn.sigmoid(pltpu.roll(pre, 3 * Hq, axis=1))
            g_g = jnp.tanh(pltpu.roll(pre, 2 * Hq, axis=1))
            o_g = jax.nn.sigmoid(pltpu.roll(pre, 1 * Hq, axis=1))
            c_new = f_g * c_prev + i_g * g_g
            h_new = o_g * jnp.tanh(c_new)
            return h_new, c_new

        # ---- lstm_im(input): one step from a zero state (W_hh @ 0 == 0) -----
        zeros = jnp.zeros((bt, S), jnp.float32)
        x_in = img_ref[...]
        hs, cs = [], []
        for l in range(nlayers):
            pre = jnp.dot(x_in, im_w[l][...], preferred_element_type=jnp.float32)
            h_l, c_l = lstm_cell(pre, zeros)
            hs.append(h_l)
            cs.append(c_l)
            x_in = h_l

        # ---- greedy decode loop: no grid, no host sync -----------------------
        x0 = jnp.full((bt, 1), start_tok, jnp.int32)

        def step(t, carry):
            hcur, ccur, x_prev = carry
            # Embedding of the previous token via one-hot matmul on the MXU.
            # TODO(synk): at realistic vocab sizes switch this to per-row DMA
            # gather and tile the decoder over vocab chunks (v7x VMEM budget).
            onehot = (lane_ids == x_prev).astype(jnp.float32)
            x_in = jnp.dot(onehot, enc_ref[...],
                           preferred_element_type=jnp.float32)       # (bt, nembed_pad)

            new_h, new_c = [], []
            for l in range(nlayers):
                xh = jnp.concatenate([x_in, hcur[l]], axis=1)        # 128-aligned concat
                pre = jnp.dot(xh, word_w[l][...],
                              preferred_element_type=jnp.float32)    # (bt, S)
                h_l, c_l = lstm_cell(pre, ccur[l])
                new_h.append(h_l)
                new_c.append(c_l)
                x_in = h_l

            # Decoder + greedy argmax (argmax invariant under log_softmax).
            logits = jnp.dot(x_in, dec_ref[...],
                             preferred_element_type=jnp.float32)     # (bt, ntok_pad)
            if vocab_ok is not None:
                logits = jnp.where(vocab_ok, logits, -1e30)
            maxv = jnp.max(logits, axis=-1, keepdims=True)
            idx = jnp.min(jnp.where(logits == maxv, lane_ids, ntok_pad),
                          axis=-1, keepdims=True).astype(jnp.int32)  # first max idx
            tok_ref[t] = idx
            return tuple(new_h), tuple(new_c), idx

        lax.fori_loop(0, nseq, step, (tuple(hs), tuple(cs), x0))

    return kernel


# ---------------------------------------------------------------------------
# Weight packing: 4 gates share one 4*Hq-lane block; zero rows cover padded /
# junk input lanes so the padded math is exact.
# ---------------------------------------------------------------------------
def _pack_word_lstm(key, din, din_pad, H, Hq):
    """W = [W_ih.T ; W_hh.T] -> (din_pad + 4*Hq, 4*Hq), PyTorch gate order."""
    S = 4 * Hq
    k1, k2 = jax.random.split(key)
    std = 1.0 / np.sqrt(H)
    w_ih = np.asarray(jax.random.uniform(k1, (4 * H, din), jnp.float32, -std, std))
    w_hh = np.asarray(jax.random.uniform(k2, (4 * H, H), jnp.float32, -std, std))
    W = np.zeros((din_pad + S, S), np.float32)
    for g in range(4):
        W[:din, g * Hq:g * Hq + H] = w_ih[g * H:(g + 1) * H, :].T
        W[din_pad:din_pad + H, g * Hq:g * Hq + H] = w_hh[g * H:(g + 1) * H, :].T
    return jnp.asarray(W)


def _pack_im_lstm(key, din, din_pad, H, Hq):
    """lstm_im runs exactly one step from a zero state, so only W_ih is needed."""
    S = 4 * Hq
    std = 1.0 / np.sqrt(H)
    w_ih = np.asarray(jax.random.uniform(key, (4 * H, din), jnp.float32, -std, std))
    W = np.zeros((din_pad, S), np.float32)
    for g in range(4):
        W[:din, g * Hq:g * Hq + H] = w_ih[g * H:(g + 1) * H, :].T
    return jnp.asarray(W)


# ---------------------------------------------------------------------------
# Model
# ---------------------------------------------------------------------------
class LanguageModelPallas:
    """Eval-mode (greedy decode) forward of Language_Model (rnn_type='LSTM_im',
    bias=False, dropout=0) as a single fused Pallas TPU kernel."""

    def __init__(self, ntoken, nimg, nhidden, nembed, nlayers, nseq, voc_sign, key):
        self.ntoken, self.nimg, self.nhidden = ntoken, nimg, nhidden
        self.nembed, self.nlayers, self.nseq = nembed, nlayers, nseq
        self.start, self.end, self.null = voc_sign['start'], voc_sign['end'], voc_sign['null']

        self.Hq = _round_up(nhidden, 32)
        self.S = 4 * self.Hq                       # packed gate/state lane width
        assert self.S % LANE == 0
        self.ntok_pad = _round_up(ntoken, LANE)
        self.nembed_pad = _round_up(nembed, LANE)
        self.nimg_pad = _round_up(nimg, LANE)

        keys = jax.random.split(key, 2 + 2 * nlayers)
        initrange = 0.1

        # encoder: nn.Embedding(ntoken, nembed), uniform(-0.1, 0.1)
        enc = np.asarray(jax.random.uniform(keys[0], (ntoken, nembed),
                                            jnp.float32, -initrange, initrange))
        enc_pad = np.zeros((self.ntok_pad, self.nembed_pad), np.float32)
        enc_pad[:ntoken, :nembed] = enc
        self.enc_w = jnp.asarray(enc_pad)

        # decoder: nn.Linear(nhidden, ntoken, bias=False), uniform(-0.1, 0.1)
        dec = np.asarray(jax.random.uniform(keys[1], (ntoken, nhidden),
                                            jnp.float32, -initrange, initrange))
        decT = np.zeros((self.S, self.ntok_pad), np.float32)
        decT[:nhidden, :ntoken] = dec.T
        self.dec_wT = jnp.asarray(decT)

        self.im_w, self.word_w = [], []
        for l in range(nlayers):
            din_im, din_im_pad = (nimg, self.nimg_pad) if l == 0 else (nhidden, self.S)
            din_wd, din_wd_pad = (nembed, self.nembed_pad) if l == 0 else (nhidden, self.S)
            self.im_w.append(_pack_im_lstm(keys[2 + 2 * l], din_im, din_im_pad,
                                           nhidden, self.Hq))
            self.word_w.append(_pack_word_lstm(keys[3 + 2 * l], din_wd, din_wd_pad,
                                               nhidden, self.Hq))

        self._fwd = jax.jit(self._device_forward)

    # -- device side: one fused pallas_call, everything resident in VMEM -----
    def _device_forward(self, img_pad):
        Bp = img_pad.shape[0]
        bt = Bp if Bp <= 8 else 8          # batch block; >1 block => multi-TC on v7x
        nb = Bp // bt
        L, S = self.nlayers, self.S

        const = lambda i: (0, 0)
        in_specs = [pl.BlockSpec((bt, self.nimg_pad), lambda i: (i, 0)),
                    pl.BlockSpec(self.enc_w.shape, const),
                    pl.BlockSpec(self.dec_wT.shape, const)]
        in_specs += [pl.BlockSpec(w.shape, const) for w in self.im_w]
        in_specs += [pl.BlockSpec(w.shape, const) for w in self.word_w]
        out_specs = pl.BlockSpec((self.nseq, bt, 1), lambda i: (0, i, 0))

        weight_bytes = sum(int(np.prod(w.shape)) * 4
                           for w in (self.enc_w, self.dec_wT, *self.im_w, *self.word_w))
        step_flops = 2 * bt * (self.ntok_pad * self.nembed_pad
                               + sum(w.shape[0] * w.shape[1] for w in self.word_w)
                               + S * self.ntok_pad)
        im_flops = 2 * bt * sum(w.shape[0] * w.shape[1] for w in self.im_w)
        cost = pl.CostEstimate(
            flops=int(nb * (im_flops + self.nseq * step_flops)),
            transcendentals=int(nb * (self.nseq + 1) * L * 5 * bt * S),
            bytes_accessed=int(weight_bytes + 4 * Bp * self.nimg_pad
                               + 4 * self.nseq * Bp))

        tokens = pl.pallas_call(
            _make_decode_kernel(L, self.ntoken, self.nseq, self.start),
            out_shape=jax.ShapeDtypeStruct((self.nseq, Bp, 1), jnp.int32),
            grid_spec=pltpu.PrefetchScalarGridSpec(
                num_scalar_prefetch=0,
                grid=(nb,),
                in_specs=in_specs,
                out_specs=out_specs),
            compiler_params=pltpu.CompilerParams(
                dimension_semantics=("parallel",),
                vmem_limit_bytes=int(min(100 * 2 ** 20,
                                         max(16 * 2 ** 20, 6 * weight_bytes)))),
            cost_estimate=cost,
        )(img_pad, self.enc_w, self.dec_wT, *self.im_w, *self.word_w)
        return tokens

    # -- host side: single transfer + PyTorch early-break truncation ---------
    def forward_eval(self, img_feat):
        """Greedy decode.  img_feat: (B, nimg) float32 -> (B, T) int32 tokens."""
        img_feat = jnp.asarray(img_feat, jnp.float32)
        B, nimg = img_feat.shape
        bt = B if B <= 8 else 8
        Bp = _round_up(B, bt)
        img_pad = jnp.zeros((Bp, self.nimg_pad), jnp.float32)
        img_pad = img_pad.at[:B, :nimg].set(img_feat)

        tokens = jax.block_until_ready(self._fwd(img_pad))
        tok = np.asarray(tokens)[:, :B, 0]                       # (nseq, B), one sync

        # Reproduce `flag[x == end] = 0; if flag.sum() == 0: break` truncation.
        seen_end = np.cumsum(tok == self.end, axis=0) > 0
        all_done = seen_end.all(axis=1)
        T = int(np.argmax(all_done)) + 1 if bool(all_done.any()) else self.nseq

        # torch: stack(T, B).squeeze().transpose(0, 1) -> (B, T) for B>1, T>1.
        return jnp.asarray(tok[:T].T.astype(np.int32))

    # TODO(synk): training-mode branch (weighted cross-entropy over a teacher-forced
    # sequence with host-side length trimming) and beam search are not implemented;
    # only the eval / greedy-decode forward is reproduced.


# ---------------------------------------------------------------------------
if __name__ == "__main__":
    B = 2
    ntoken, nimg, nhidden, nembed = 64, 32, 32, 32
    nlayers, nseq = 2, 8
    voc_sign = {'start': 0, 'end': 1, 'null': 2}

    key = jax.random.PRNGKey(0)
    k_model, k_in = jax.random.split(key)
    model = LanguageModelPallas(ntoken, nimg, nhidden, nembed,
                                nlayers, nseq, voc_sign, k_model)

    img_feat = jax.random.normal(k_in, (B, nimg), jnp.float32)
    out = model.forward_eval(img_feat)
    out = jax.block_until_ready(out)
    assert out.ndim == 2 and out.shape[0] == B and out.dtype == jnp.int32
    print("KERNEL_OK")
</pallas_src>

<mosaic_0001>
module attributes {stable_mosaic.version = 11 : i64} {
  func.func @kernel(%arg0: i32, %arg1: memref<2x128xf32, #tpu.memory_space<vmem>>, %arg2: memref<128x128xf32, #tpu.memory_space<vmem>>, %arg3: memref<128x128xf32, #tpu.memory_space<vmem>>, %arg4: memref<128x128xf32, #tpu.memory_space<vmem>>, %arg5: memref<128x128xf32, #tpu.memory_space<vmem>>, %arg6: memref<256x128xf32, #tpu.memory_space<vmem>>, %arg7: memref<256x128xf32, #tpu.memory_space<vmem>>, %arg8: memref<8x2x1xi32, #tpu.memory_space<vmem>>) attributes {dimension_semantics = [#tpu.dimension_semantics<parallel>], iteration_bounds = array<i64: 1>, scalar_prefetch = 0 : i64, scratch_operands = 0 : i64, tpu.core_type = #tpu.core_type<tc>, window_params = [{transform_indices = @transform_0, window_bounds = array<i64: 2, 128>}, {pipeline_mode = #tpu.pipeline_mode<synchronous>, transform_indices = @transform_1, window_bounds = array<i64: 128, 128>}, {pipeline_mode = #tpu.pipeline_mode<synchronous>, transform_indices = @transform_2, window_bounds = array<i64: 128, 128>}, {pipeline_mode = #tpu.pipeline_mode<synchronous>, transform_indices = @transform_3, window_bounds = array<i64: 128, 128>}, {pipeline_mode = #tpu.pipeline_mode<synchronous>, transform_indices = @transform_4, window_bounds = array<i64: 128, 128>}, {pipeline_mode = #tpu.pipeline_mode<synchronous>, transform_indices = @transform_5, window_bounds = array<i64: 256, 128>}, {pipeline_mode = #tpu.pipeline_mode<synchronous>, transform_indices = @transform_6, window_bounds = array<i64: 256, 128>}, {transform_indices = @transform_7, window_bounds = array<i64: 8, 2, 1>}]} {
    %0 = tpu.iota {dimensions = array<i32: 1>} : vector<2x128xi32>
    %c64_i32 = arith.constant 64 : i32
    %1 = vector.broadcast %c64_i32 : i32 to vector<2x128xi32>
    %2 = arith.cmpi slt, %0, %1 : vector<2x128xi32>
    %cst = arith.constant 0.000000e+00 : f32
    %3 = vector.broadcast %cst : f32 to vector<2x128xf32>
    %c0 = arith.constant 0 : index
    %c0_0 = arith.constant 0 : index
    %4 = vector.load %arg1[%c0, %c0_0] : memref<2x128xf32, #tpu.memory_space<vmem>>, vector<2x128xf32>
    %c0_1 = arith.constant 0 : index
    %c0_2 = arith.constant 0 : index
    %5 = vector.load %arg4[%c0_1, %c0_2] : memref<128x128xf32, #tpu.memory_space<vmem>>, vector<128x128xf32>
    %cst_3 = arith.constant dense<0.000000e+00> : vector<2x128xf32>
    %6 = tpu.matmul %4, %5, %cst_3 {dimension_numbers = #tpu.dot_dimension_numbers<[1], [0], [0], [1], [0, 0, 1, 1], [], []>} : vector<2x128xf32>, vector<128x128xf32>, vector<2x128xf32> -> vector<2x128xf32>
    %7 = arith.negf %6 : vector<2x128xf32>
    %8 = math.exp %7 : vector<2x128xf32>
    %cst_4 = arith.constant 1.000000e+00 : f32
    %9 = vector.broadcast %cst_4 : f32 to vector<2x128xf32>
    %10 = arith.addf %9, %8 : vector<2x128xf32>
    %11 = arith.divf %9, %10 : vector<2x128xf32>
    %c96_i32 = arith.constant 96 : i32
    %12 = tpu.dynamic_rotate %6 by %c96_i32 dim 1 : vector<2x128xf32>, i32 -> vector<2x128xf32>
    %13 = arith.negf %12 : vector<2x128xf32>
    %14 = math.exp %13 : vector<2x128xf32>
    %cst_5 = arith.constant 1.000000e+00 : f32
    %15 = vector.broadcast %cst_5 : f32 to vector<2x128xf32>
    %16 = arith.addf %15, %14 : vector<2x128xf32>
    %17 = arith.divf %15, %16 : vector<2x128xf32>
    %c64_i32_6 = arith.constant 64 : i32
    %18 = tpu.dynamic_rotate %6 by %c64_i32_6 dim 1 : vector<2x128xf32>, i32 -> vector<2x128xf32>
    %19 = math.tanh %18 : vector<2x128xf32>
    %c32_i32 = arith.constant 32 : i32
    %20 = tpu.dynamic_rotate %6 by %c32_i32 dim 1 : vector<2x128xf32>, i32 -> vector<2x128xf32>
    %21 = arith.negf %20 : vector<2x128xf32>
    %22 = math.exp %21 : vector<2x128xf32>
    %cst_7 = arith.constant 1.000000e+00 : f32
    %23 = vector.broadcast %cst_7 : f32 to vector<2x128xf32>
    %24 = arith.addf %23, %22 : vector<2x128xf32>
    %25 = arith.divf %23, %24 : vector<2x128xf32>
    %26 = arith.mulf %17, %3 : vector<2x128xf32>
    %27 = arith.mulf %11, %19 : vector<2x128xf32>
    %28 = arith.addf %26, %27 : vector<2x128xf32>
    %29 = math.tanh %28 : vector<2x128xf32>
    %30 = arith.mulf %25, %29 : vector<2x128xf32>
    %c0_8 = arith.constant 0 : index
    %c0_9 = arith.constant 0 : index
    %31 = vector.load %arg5[%c0_8, %c0_9] : memref<128x128xf32, #tpu.memory_space<vmem>>, vector<128x128xf32>
    %cst_10 = arith.constant dense<0.000000e+00> : vector<2x128xf32>
    %32 = tpu.matmul %30, %31, %cst_10 {dimension_numbers = #tpu.dot_dimension_numbers<[1], [0], [0], [1], [0, 0, 1, 1], [], []>} : vector<2x128xf32>, vector<128x128xf32>, vector<2x128xf32> -> vector<2x128xf32>
    %33 = arith.negf %32 : vector<2x128xf32>
    %34 = math.exp %33 : vector<2x128xf32>
    %cst_11 = arith.constant 1.000000e+00 : f32
    %35 = vector.broadcast %cst_11 : f32 to vector<2x128xf32>
    %36 = arith.addf %35, %34 : vector<2x128xf32>
    %37 = arith.divf %35, %36 : vector<2x128xf32>
    %c96_i32_12 = arith.constant 96 : i32
    %38 = tpu.dynamic_rotate %32 by %c96_i32_12 dim 1 : vector<2x128xf32>, i32 -> vector<2x128xf32>
    %39 = arith.negf %38 : vector<2x128xf32>
    %40 = math.exp %39 : vector<2x128xf32>
    %cst_13 = arith.constant 1.000000e+00 : f32
    %41 = vector.broadcast %cst_13 : f32 to vector<2x128xf32>
    %42 = arith.addf %41, %40 : vector<2x128xf32>
    %43 = arith.divf %41, %42 : vector<2x128xf32>
    %c64_i32_14 = arith.constant 64 : i32
    %44 = tpu.dynamic_rotate %32 by %c64_i32_14 dim 1 : vector<2x128xf32>, i32 -> vector<2x128xf32>
    %45 = math.tanh %44 : vector<2x128xf32>
    %c32_i32_15 = arith.constant 32 : i32
    %46 = tpu.dynamic_rotate %32 by %c32_i32_15 dim 1 : vector<2x128xf32>, i32 -> vector<2x128xf32>
    %47 = arith.negf %46 : vector<2x128xf32>
    %48 = math.exp %47 : vector<2x128xf32>
    %cst_16 = arith.constant 1.000000e+00 : f32
    %49 = vector.broadcast %cst_16 : f32 to vector<2x128xf32>
    %50 = arith.addf %49, %48 : vector<2x128xf32>
    %51 = arith.divf %49, %50 : vector<2x128xf32>
    %52 = arith.mulf %43, %3 : vector<2x128xf32>
    %53 = arith.mulf %37, %45 : vector<2x128xf32>
    %54 = arith.addf %52, %53 : vector<2x128xf32>
    %55 = math.tanh %54 : vector<2x128xf32>
    %56 = arith.mulf %51, %55 : vector<2x128xf32>
    %c0_i32 = arith.constant 0 : i32
    %57 = vector.broadcast %c0_i32 : i32 to vector<2x1xi32>
    %c0_i32_17 = arith.constant 0 : i32
    %c8_i32 = arith.constant 8 : i32
    %58 = arith.addi %c0_i32_17, %c8_i32 : i32
    %c1_i32 = arith.constant 1 : i32
    %59:5 = scf.for %arg9 = %c0_i32_17 to %58 step %c1_i32 iter_args(%arg10 = %30, %arg11 = %56, %arg12 = %28, %arg13 = %54, %arg14 = %57) -> (vector<2x128xf32>, vector<2x128xf32>, vector<2x128xf32>, vector<2x128xf32>, vector<2x1xi32>)  : i32 {
      %60 = vector.broadcast %arg14 : vector<2x1xi32> to vector<2x128xi32>
      %61 = arith.cmpi eq, %0, %60 : vector<2x128xi32>
      %62 = arith.extui %61 : vector<2x128xi1> to vector<2x128xi32>
      %63 = arith.sitofp %62 : vector<2x128xi32> to vector<2x128xf32>
      %c0_19 = arith.constant 0 : index
      %c0_20 = arith.constant 0 : index
      %64 = vector.load %arg2[%c0_19, %c0_20] : memref<128x128xf32, #tpu.memory_space<vmem>>, vector<128x128xf32>
      %cst_21 = arith.constant dense<0.000000e+00> : vector<2x128xf32>
      %65 = tpu.matmul %63, %64, %cst_21 {dimension_numbers = #tpu.dot_dimension_numbers<[1], [0], [0], [1], [0, 0, 1, 1], [], []>} : vector<2x128xf32>, vector<128x128xf32>, vector<2x128xf32> -> vector<2x128xf32>
      %66 = tpu.concatenate %65, %arg10 in 1 : vector<2x128xf32>, vector<2x128xf32> -> vector<2x256xf32>
      %c0_22 = arith.constant 0 : index
      %c0_23 = arith.constant 0 : index
      %67 = vector.load %arg6[%c0_22, %c0_23] : memref<256x128xf32, #tpu.memory_space<vmem>>, vector<256x128xf32>
      %cst_24 = arith.constant dense<0.000000e+00> : vector<2x128xf32>
      %68 = tpu.matmul %66, %67, %cst_24 {dimension_numbers = #tpu.dot_dimension_numbers<[1], [0], [0], [1], [0, 0, 1, 1], [], []>} : vector<2x256xf32>, vector<256x128xf32>, vector<2x128xf32> -> vector<2x128xf32>
      %69 = arith.negf %68 : vector<2x128xf32>
      %70 = math.exp %69 : vector<2x128xf32>
      %cst_25 = arith.constant 1.000000e+00 : f32
      %71 = vector.broadcast %cst_25 : f32 to vector<2x128xf32>
      %72 = arith.addf %71, %70 : vector<2x128xf32>
      %73 = arith.divf %71, %72 : vector<2x128xf32>
      %c96_i32_26 = arith.constant 96 : i32
      %74 = tpu.dynamic_rotate %68 by %c96_i32_26 dim 1 : vector<2x128xf32>, i32 -> vector<2x128xf32>
      %75 = arith.negf %74 : vector<2x128xf32>
      %76 = math.exp %75 : vector<2x128xf32>
      %cst_27 = arith.constant 1.000000e+00 : f32
      %77 = vector.broadcast %cst_27 : f32 to vector<2x128xf32>
      %78 = arith.addf %77, %76 : vector<2x128xf32>
      %79 = arith.divf %77, %78 : vector<2x128xf32>
      %c64_i32_28 = arith.constant 64 : i32
      %80 = tpu.dynamic_rotate %68 by %c64_i32_28 dim 1 : vector<2x128xf32>, i32 -> vector<2x128xf32>
      %81 = math.tanh %80 : vector<2x128xf32>
      %c32_i32_29 = arith.constant 32 : i32
      %82 = tpu.dynamic_rotate %68 by %c32_i32_29 dim 1 : vector<2x128xf32>, i32 -> vector<2x128xf32>
      %83 = arith.negf %82 : vector<2x128xf32>
      %84 = math.exp %83 : vector<2x128xf32>
      %cst_30 = arith.constant 1.000000e+00 : f32
      %85 = vector.broadcast %cst_30 : f32 to vector<2x128xf32>
      %86 = arith.addf %85, %84 : vector<2x128xf32>
      %87 = arith.divf %85, %86 : vector<2x128xf32>
      %88 = arith.mulf %79, %arg12 : vector<2x128xf32>
      %89 = arith.mulf %73, %81 : vector<2x128xf32>
      %90 = arith.addf %88, %89 : vector<2x128xf32>
      %91 = math.tanh %90 : vector<2x128xf32>
      %92 = arith.mulf %87, %91 : vector<2x128xf32>
      %93 = tpu.concatenate %92, %arg11 in 1 : vector<2x128xf32>, vector<2x128xf32> -> vector<2x256xf32>
      %c0_31 = arith.constant 0 : index
      %c0_32 = arith.constant 0 : index
      %94 = vector.load %arg7[%c0_31, %c0_32] : memref<256x128xf32, #tpu.memory_space<vmem>>, vector<256x128xf32>
      %cst_33 = arith.constant dense<0.000000e+00> : vector<2x128xf32>
      %95 = tpu.matmul %93, %94, %cst_33 {dimension_numbers = #tpu.dot_dimension_numbers<[1], [0], [0], [1], [0, 0, 1, 1], [], []>} : vector<2x256xf32>, vector<256x128xf32>, vector<2x128xf32> -> vector<2x128xf32>
      %96 = arith.negf %95 : vector<2x128xf32>
      %97 = math.exp %96 : vector<2x128xf32>
      %cst_34 = arith.constant 1.000000e+00 : f32
      %98 = vector.broadcast %cst_34 : f32 to vector<2x128xf32>
      %99 = arith.addf %98, %97 : vector<2x128xf32>
      %100 = arith.divf %98, %99 : vector<2x128xf32>
      %c96_i32_35 = arith.constant 96 : i32
      %101 = tpu.dynamic_rotate %95 by %c96_i32_35 dim 1 : vector<2x128xf32>, i32 -> vector<2x128xf32>
      %102 = arith.negf %101 : vector<2x128xf32>
      %103 = math.exp %102 : vector<2x128xf32>
      %cst_36 = arith.constant 1.000000e+00 : f32
      %104 = vector.broadcast %cst_36 : f32 to vector<2x128xf32>
      %105 = arith.addf %104, %103 : vector<2x128xf32>
      %106 = arith.divf %104, %105 : vector<2x128xf32>
      %c64_i32_37 = arith.constant 64 : i32
      %107 = tpu.dynamic_rotate %95 by %c64_i32_37 dim 1 : vector<2x128xf32>, i32 -> vector<2x128xf32>
      %108 = math.tanh %107 : vector<2x128xf32>
      %c32_i32_38 = arith.constant 32 : i32
      %109 = tpu.dynamic_rotate %95 by %c32_i32_38 dim 1 : vector<2x128xf32>, i32 -> vector<2x128xf32>
      %110 = arith.negf %109 : vector<2x128xf32>
      %111 = math.exp %110 : vector<2x128xf32>
      %cst_39 = arith.constant 1.000000e+00 : f32
      %112 = vector.broadcast %cst_39 : f32 to vector<2x128xf32>
      %113 = arith.addf %112, %111 : vector<2x128xf32>
      %114 = arith.divf %112, %113 : vector<2x128xf32>
      %115 = arith.mulf %106, %arg13 : vector<2x128xf32>
      %116 = arith.mulf %100, %108 : vector<2x128xf32>
      %117 = arith.addf %115, %116 : vector<2x128xf32>
      %118 = math.tanh %117 : vector<2x128xf32>
      %119 = arith.mulf %114, %118 : vector<2x128xf32>
      %c0_40 = arith.constant 0 : index
      %c0_41 = arith.constant 0 : index
      %120 = vector.load %arg3[%c0_40, %c0_41] : memref<128x128xf32, #tpu.memory_space<vmem>>, vector<128x128xf32>
      %cst_42 = arith.constant dense<0.000000e+00> : vector<2x128xf32>
      %121 = tpu.matmul %119, %120, %cst_42 {dimension_numbers = #tpu.dot_dimension_numbers<[1], [0], [0], [1], [0, 0, 1, 1], [], []>} : vector<2x128xf32>, vector<128x128xf32>, vector<2x128xf32> -> vector<2x128xf32>
      %cst_43 = arith.constant -1.000000e+30 : f32
      %122 = vector.broadcast %cst_43 : f32 to vector<2x128xf32>
      %123 = arith.select %2, %121, %122 : vector<2x128xi1>, vector<2x128xf32>
      %cst_44 = arith.constant dense<0xFF800000> : vector<2xf32>
      %124 = vector.multi_reduction <maximumf>, %123, %cst_44 [1] : vector<2x128xf32> to vector<2xf32>
      %125 = vector.shape_cast %124 : vector<2xf32> to vector<2x1xf32>
      %126 = vector.broadcast %125 : vector<2x1xf32> to vector<2x128xf32>
      %127 = arith.cmpf oeq, %123, %126 : vector<2x128xf32>
      %c128_i32 = arith.constant 128 : i32
      %128 = vector.broadcast %c128_i32 : i32 to vector<2x128xi32>
      %129 = arith.select %127, %0, %128 : vector<2x128xi1>, vector<2x128xi32>
      %cst_45 = arith.constant dense<2147483647> : vector<2xi32>
      %130 = vector.multi_reduction <minsi>, %129, %cst_45 [1] : vector<2x128xi32> to vector<2xi32>
      %131 = vector.shape_cast %130 : vector<2xi32> to vector<2x1xi32>
      %132 = arith.index_cast %arg9 : i32 to index
      %c0_46 = arith.constant 0 : index
      %c0_47 = arith.constant 0 : index
      %133 = vector.load %arg8[%132, %c0_46, %c0_47] : memref<8x2x1xi32, #tpu.memory_space<vmem>>, vector<1x2x1xi32>
      %134 = vector.shape_cast %133 : vector<1x2x1xi32> to vector<2x1xi32>
      %135 = vector.shape_cast %131 : vector<2x1xi32> to vector<1x2x1xi32>
      tpu.vector_store %arg8[%132, %c0_46, %c0_47], %135 {strides = array<i32>} : memref<8x2x1xi32, #tpu.memory_space<vmem>>, vector<1x2x1xi32>,
      scf.yield %92, %119, %90, %117, %131 : vector<2x128xf32>, vector<2x128xf32>, vector<2x128xf32>, vector<2x128xf32>, vector<2x1xi32>
    }
    %c8_i32_18 = arith.constant 8 : i32
    return
  }
  func.func @transform_0(%arg0: i32) -> (i32, i32) {
    %c0_i32 = arith.constant 0 : i32
    %c0_i32_0 = arith.constant 0 : i32
    return %arg0, %c0_i32 : i32, i32
  }
  func.func @transform_1(%arg0: i32) -> (i32, i32) {
    %c0_i32 = arith.constant 0 : i32
    %c0_i32_0 = arith.constant 0 : i32
    %c0_i32_1 = arith.constant 0 : i32
    return %c0_i32, %c0_i32_0 : i32, i32
  }
  func.func @transform_2(%arg0: i32) -> (i32, i32) {
    %c0_i32 = arith.constant 0 : i32
    %c0_i32_0 = arith.constant 0 : i32
    %c0_i32_1 = arith.constant 0 : i32
    return %c0_i32, %c0_i32_0 : i32, i32
  }
  func.func @transform_3(%arg0: i32) -> (i32, i32) {
    %c0_i32 = arith.constant 0 : i32
    %c0_i32_0 = arith.constant 0 : i32
    %c0_i32_1 = arith.constant 0 : i32
    return %c0_i32, %c0_i32_0 : i32, i32
  }
  func.func @transform_4(%arg0: i32) -> (i32, i32) {
    %c0_i32 = arith.constant 0 : i32
    %c0_i32_0 = arith.constant 0 : i32
    %c0_i32_1 = arith.constant 0 : i32
    return %c0_i32, %c0_i32_0 : i32, i32
  }
  func.func @transform_5(%arg0: i32) -> (i32, i32) {
    %c0_i32 = arith.constant 0 : i32
    %c0_i32_0 = arith.constant 0 : i32
    %c0_i32_1 = arith.constant 0 : i32
    return %c0_i32, %c0_i32_0 : i32, i32
  }
  func.func @transform_6(%arg0: i32) -> (i32, i32) {
    %c0_i32 = arith.constant 0 : i32
    %c0_i32_0 = arith.constant 0 : i32
    %c0_i32_1 = arith.constant 0 : i32
    return %c0_i32, %c0_i32_0 : i32, i32
  }
  func.func @transform_7(%arg0: i32) -> (i32, i32, i32) {
    %c0_i32 = arith.constant 0 : i32
    %c0_i32_0 = arith.constant 0 : i32
    %c0_i32_1 = arith.constant 0 : i32
    return %c0_i32, %arg0, %c0_i32_0 : i32, i32, i32
  }
}

</mosaic_0001>

<llo_original>
// kernel: _device_forward.1
$region0: #{_device_forward.1}
  #allocation0 [shape = 'u32[]', space=smem, size = 0x4, offset = 0x4, fixed_abs, tag = 'smem constant byte address 0x4 - core index']
  #allocation1 [shape = 'u32[144,128]{1,0:T(1,128)}', space=vmem, size = 0x12000, scoped, tag = 'internal scratch']
  %s0 = inlined_call_operand.hbm [shape: f32[2,128], index: 0, kind: input, shape index: {}]
  %s1 = inlined_call_operand.hbm [shape: f32[128,128], index: 1, kind: input, shape index: {}]
  %s2 = inlined_call_operand.hbm [shape: f32[128,128], index: 2, kind: input, shape index: {}]
  %s3 = inlined_call_operand.hbm [shape: f32[128,128], index: 3, kind: input, shape index: {}]
  %s4 = inlined_call_operand.hbm [shape: f32[128,128], index: 4, kind: input, shape index: {}]
  %s5 = inlined_call_operand.hbm [shape: f32[256,128], index: 5, kind: input, shape index: {}]
  %s6 = inlined_call_operand.hbm [shape: f32[256,128], index: 6, kind: input, shape index: {}]
  %s7 = inlined_call_operand.vmem [shape: s32[8,2,1], index: 7, kind: output, shape index: {}]
  %s8 = sld [smem:[#allocation0]]
  $region73: #{_device_forward.1} parent=0
    _
  %s10 = ssub.s32 1, %s8
  %s11 = scalar_select 0, %s10, %s8
  $region1: #{_device_forward.1} parent=0
    #allocation2 [shape = 'u8[1024]{0}', space=vmem, size = 0x400, scoped, tag = 'input window, operand 0, single buffered']
    #allocation3 [shape = 's32[1]{0}', space=sflag, size = 0x4, scoped, tag = 'scoped memory for _device_forward.1']
    #allocation4 [shape = 'u8[65536]{0}', space=vmem, size = 0x10000, scoped, tag = 'input window, operand 1, single buffered']
    #allocation5 [shape = 's32[1]{0}', space=sflag, size = 0x4, scoped, tag = 'scoped memory for _device_forward.1']
    #allocation6 [shape = 'u8[65536]{0}', space=vmem, size = 0x10000, scoped, tag = 'input window, operand 2, single buffered']
    #allocation7 [shape = 'u8[65536]{0}', space=vmem, size = 0x10000, scoped, tag = 'input window, operand 3, single buffered']
    #allocation8 [shape = 's32[1]{0}', space=sflag, size = 0x4, scoped, tag = 'scoped memory for _device_forward.1']
    #allocation9 [shape = 'u8[65536]{0}', space=vmem, size = 0x10000, scoped, tag = 'input window, operand 4, single buffered']
    #allocation10 [shape = 'u8[131072]{0}', space=vmem, size = 0x20000, scoped, tag = 'input window, operand 5, single buffered']
    #allocation11 [shape = 's32[1]{0}', space=sflag, size = 0x4, scoped, tag = 'scoped memory for _device_forward.1']
    #allocation12 [shape = 'u8[131072]{0}', space=vmem, size = 0x20000, scoped, tag = 'input window, operand 6, single buffered']
    %12 = vsyncpa [#allocation3], 0
    %13 = vsyncpa [#allocation5], 0
    %14 = vsyncpa [#allocation8], 0
    %15 = vsyncpa [#allocation11], 0
    // Predicated region
    $region2: #{_device_forward.1} parent=1 // pred_check
      _
    $region3: #{_device_forward.1} parent=1 // pred_check_branch
      %17 = sbr.rel (0) target = $region5
    $region4: #{_device_forward.1} parent=1 // pred_region
      %s19 = ssub.s32 32, 32
      %20 = vsyncadd [#allocation3], %s19
      %s22 = sshll.u32 [#allocation2], 4
      %s23 = int_to_ptr.vmem [resolvable:$true] %s22
      %25 = dma.hbm_to_vmem [thread:$0]  %s0, 32, %s23, [#allocation3]
    $region5: #{_device_forward.1} parent=1 // pred_fallthru
      _
    // Predicated region
    $region6: #{_device_forward.1} parent=1 // pred_check
      _
    $region7: #{_device_forward.1} parent=1 // pred_check_branch
      %27 = sbr.rel (0) target = $region9
    $region8: #{_device_forward.1} parent=1 // pred_region
      %s29 = ssub.s32 2048, 2048
      %30 = vsyncadd [#allocation5], %s29
      %s31 = sshll.u32 [#allocation4], 4
      %s32 = int_to_ptr.vmem [resolvable:$true] %s31
      %37 = dma.hbm_to_vmem [thread:$0]  %s1, 2048, %s32, [#allocation5], 128, 128, 8
    $region9: #{_device_forward.1} parent=1 // pred_fallthru
      _
    // Predicated region
    $region10: #{_device_forward.1} parent=1 // pred_check
      _
    $region11: #{_device_forward.1} parent=1 // pred_check_branch
      %39 = sbr.rel (0) target = $region13
    $region12: #{_device_forward.1} parent=1 // pred_region
      %s41 = ssub.s32 2048, 2048
      %42 = vsyncadd [#allocation5], %s41
      %s43 = sshll.u32 [#allocation6], 4
      %s44 = int_to_ptr.vmem [resolvable:$true] %s43
      %49 = dma.hbm_to_vmem [thread:$0]  %s2, 2048, %s44, [#allocation5], 128, 128, 8
    $region13: #{_device_forward.1} parent=1 // pred_fallthru
      _
    // Predicated region
    $region14: #{_device_forward.1} parent=1 // pred_check
      _
    $region15: #{_device_forward.1} parent=1 // pred_check_branch
      %51 = sbr.rel (0) target = $region17
    $region16: #{_device_forward.1} parent=1 // pred_region
      %s53 = ssub.s32 2048, 2048
      %54 = vsyncadd [#allocation8], %s53
      %s55 = sshll.u32 [#allocation7], 4
      %s56 = int_to_ptr.vmem [resolvable:$true] %s55
      %61 = dma.hbm_to_vmem [thread:$0]  %s3, 2048, %s56, [#allocation8], 128, 128, 8
    $region17: #{_device_forward.1} parent=1 // pred_fallthru
      _
    // Predicated region
    $region18: #{_device_forward.1} parent=1 // pred_check
      _
    $region19: #{_device_forward.1} parent=1 // pred_check_branch
      %63 = sbr.rel (0) target = $region21
    $region20: #{_device_forward.1} parent=1 // pred_region
      %s65 = ssub.s32 2048, 2048
      %66 = vsyncadd [#allocation8], %s65
      %s67 = sshll.u32 [#allocation9], 4
      %s68 = int_to_ptr.vmem [resolvable:$true] %s67
      %73 = dma.hbm_to_vmem [thread:$0]  %s4, 2048, %s68, [#allocation8], 128, 128, 8
    $region21: #{_device_forward.1} parent=1 // pred_fallthru
      _
    // Predicated region
    $region22: #{_device_forward.1} parent=1 // pred_check
      _
    $region23: #{_device_forward.1} parent=1 // pred_check_branch
      %75 = sbr.rel (0) target = $region25
    $region24: #{_device_forward.1} parent=1 // pred_region
      %s77 = ssub.s32 4096, 4096
      %78 = vsyncadd [#allocation11], %s77
      %s79 = sshll.u32 [#allocation10], 4
      %s80 = int_to_ptr.vmem [resolvable:$true] %s79
      %85 = dma.hbm_to_vmem [thread:$0]  %s5, 4096, %s80, [#allocation11], 128, 128, 8
    $region25: #{_device_forward.1} parent=1 // pred_fallthru
      _
    // Predicated region
    $region26: #{_device_forward.1} parent=1 // pred_check
      _
    $region27: #{_device_forward.1} parent=1 // pred_check_branch
      %87 = sbr.rel (0) target = $region29
    $region28: #{_device_forward.1} parent=1 // pred_region
      %s89 = ssub.s32 4096, 4096
      %90 = vsyncadd [#allocation11], %s89
      %s91 = sshll.u32 [#allocation12], 4
      %s92 = int_to_ptr.vmem [resolvable:$true] %s91
      %97 = dma.hbm_to_vmem [thread:$0]  %s6, 4096, %s92, [#allocation11], 128, 128, 8
    $region29: #{_device_forward.1} parent=1 // pred_fallthru
      _
    // Predicated region
    $region30: #{_device_forward.1} parent=1 // pred_check
      _
    $region31: #{_device_forward.1} parent=1 // pred_check_branch
      %99 = sbr.rel (0) target = $region33
    $region32: #{_device_forward.1} parent=1 // pred_region
      %100 = dma.done [#allocation3], 32
    $region33: #{_device_forward.1} parent=1 // pred_fallthru
      _
    // Predicated region
    $region34: #{_device_forward.1} parent=1 // pred_check
      _
    $region35: #{_device_forward.1} parent=1 // pred_check_branch
      %102 = sbr.rel (0) target = $region37
    $region36: #{_device_forward.1} parent=1 // pred_region
      %103 = dma.done [#allocation5], 2048
    $region37: #{_device_forward.1} parent=1 // pred_fallthru
      _
    // Predicated region
    $region38: #{_device_forward.1} parent=1 // pred_check
      _
    $region39: #{_device_forward.1} parent=1 // pred_check_branch
      %105 = sbr.rel (0) target = $region41
    $region40: #{_device_forward.1} parent=1 // pred_region
      %106 = dma.done [#allocation5], 2048
    $region41: #{_device_forward.1} parent=1 // pred_fallthru
      _
    // Predicated region
    $region42: #{_device_forward.1} parent=1 // pred_check
      _
    $region43: #{_device_forward.1} parent=1 // pred_check_branch
      %108 = sbr.rel (0) target = $region45
    $region44: #{_device_forward.1} parent=1 // pred_region
      %109 = dma.done [#allocation8], 2048
    $region45: #{_device_forward.1} parent=1 // pred_fallthru
      _
    // Predicated region
    $region46: #{_device_forward.1} parent=1 // pred_check
      _
    $region47: #{_device_forward.1} parent=1 // pred_check_branch
      %111 = sbr.rel (0) target = $region49
    $region48: #{_device_forward.1} parent=1 // pred_region
      %112 = dma.done [#allocation8], 2048
    $region49: #{_device_forward.1} parent=1 // pred_fallthru
      _
    // Predicated region
    $region50: #{_device_forward.1} parent=1 // pred_check
      _
    $region51: #{_device_forward.1} parent=1 // pred_check_branch
      %114 = sbr.rel (0) target = $region53
    $region52: #{_device_forward.1} parent=1 // pred_region
      %115 = dma.done [#allocation11], 4096
    $region53: #{_device_forward.1} parent=1 // pred_fallthru
      _
    // Predicated region
    $region54: #{_device_forward.1} parent=1 // pred_check
      _
    $region55: #{_device_forward.1} parent=1 // pred_check_branch
      %117 = sbr.rel (0) target = $region57
    $region56: #{_device_forward.1} parent=1 // pred_region
      %118 = dma.done [#allocation11], 4096
    $region57: #{_device_forward.1} parent=1 // pred_fallthru
      _
    %v119 = vlaneseq
    %v120 = vand.u32 %v119, 127
    %vm121 = vcmp.lt.s32.totalorder %v120, 64
    %v122 = vld [vmem:[#allocation2] sm:$0x3]
    %v123 = vld [vmem:[#allocation7] sm:$0xff]
    %v124 = vld [vmem:[#allocation7 + $0x8] sm:$0xff]
    %v125 = vld [vmem:[#allocation7 + $0x10] sm:$0xff]
    %v126 = vld [vmem:[#allocation7 + $0x18] sm:$0xff]
    %v127 = vld [vmem:[#allocation7 + $0x20] sm:$0xff]
    %v128 = vld [vmem:[#allocation7 + $0x28] sm:$0xff]
    %v129 = vld [vmem:[#allocation7 + $0x30] sm:$0xff]
    %v130 = vld [vmem:[#allocation7 + $0x38] sm:$0xff]
    %v131 = vld [vmem:[#allocation7 + $0x40] sm:$0xff]
    %v132 = vld [vmem:[#allocation7 + $0x48] sm:$0xff]
    %v133 = vld [vmem:[#allocation7 + $0x50] sm:$0xff]
    %v134 = vld [vmem:[#allocation7 + $0x58] sm:$0xff]
    %v135 = vld [vmem:[#allocation7 + $0x60] sm:$0xff]
    %v136 = vld [vmem:[#allocation7 + $0x68] sm:$0xff]
    %v137 = vld [vmem:[#allocation7 + $0x70] sm:$0xff]
    %v138 = vld [vmem:[#allocation7 + $0x78] sm:$0xff]
    %139 = vmatprep.subr.mxu0 0.0
    %140 = vmatpush1.msra.mxu0 %v123
    %141 = vmatprep.subr.mxu0 0.0
    %142 = vmatpush1.msra.mxu0 %v124
    %143 = vmatprep.subr.mxu0 0.0
    %144 = vmatpush1.msra.mxu0 %v125
    %145 = vmatprep.subr.mxu0 0.0
    %146 = vmatpush1.msra.mxu0 %v126
    %147 = vmatprep.subr.mxu0 0.0
    %148 = vmatpush1.msra.mxu0 %v127
    %149 = vmatprep.subr.mxu0 0.0
    %150 = vmatpush1.msra.mxu0 %v128
    %151 = vmatprep.subr.mxu0 0.0
    %152 = vmatpush1.msra.mxu0 %v129
    %153 = vmatprep.subr.mxu0 0.0
    %154 = vmatpush1.msra.mxu0 %v130
    %155 = vmatprep.subr.mxu0 0.0
    %156 = vmatpush1.msra.mxu0 %v131
    %157 = vmatprep.subr.mxu0 0.0
    %158 = vmatpush1.msra.mxu0 %v132
    %159 = vmatprep.subr.mxu0 0.0
    %160 = vmatpush1.msra.mxu0 %v133
    %161 = vmatprep.subr.mxu0 0.0
    %162 = vmatpush1.msra.mxu0 %v134
    %163 = vmatprep.subr.mxu0 0.0
    %164 = vmatpush1.msra.mxu0 %v135
    %165 = vmatprep.subr.mxu0 0.0
    %166 = vmatpush1.msra.mxu0 %v136
    %167 = vmatprep.subr.mxu0 0.0
    %168 = vmatpush1.msra.mxu0 %v137
    %169 = vmatprep.subr.mxu0 0.0
    %170 = vmatpush1.msra.mxu0 %v138
    %171 = vmatprep.subr.mxu0 0.0
    %172 = vmatpush1.msra.mxu0 0.0
    %173 = vmatprep.subr.mxu0 0.0
    %174 = vmatpush1.msra.mxu0 0.0
    %175 = vmatprep.subr.mxu0 0.0
    %176 = vmatpush1.msra.mxu0 0.0
    %177 = vmatprep.subr.mxu0 0.0
    %178 = vmatpush1.msra.mxu0 0.0
    %179 = vmatprep.subr.mxu0 0.0
    %180 = vmatpush1.msra.mxu0 0.0
    %181 = vmatprep.subr.mxu0 0.0
    %182 = vmatpush1.msra.mxu0 0.0
    %183 = vmatprep.subr.mxu0 0.0
    %184 = vmatpush1.msra.mxu0 0.0
    %185 = vmatprep.subr.mxu0 0.0
    %186 = vmatpush1.msra.mxu0 0.0
    %187 = vmatprep.subr.mxu0 0.0
    %188 = vmatpush1.msra.mxu0 0.0
    %189 = vmatprep.subr.mxu0 0.0
    %190 = vmatpush1.msra.mxu0 0.0
    %191 = vmatprep.subr.mxu0 0.0
    %192 = vmatpush1.msra.mxu0 0.0
    %193 = vmatprep.subr.mxu0 0.0
    %194 = vmatpush1.msra.mxu0 0.0
    %195 = vmatprep.subr.mxu0 0.0
    %196 = vmatpush1.msra.mxu0 0.0
    %197 = vmatprep.subr.mxu0 0.0
    %198 = vmatpush1.msra.mxu0 0.0
    %199 = vmatprep.subr.mxu0 0.0
    %200 = vmatpush1.msra.mxu0 0.0
    %201 = vmatprep.subr.mxu0 0.0
    %202 = vmatpush1.msra.mxu0 0.0
    %203 = vmatprep.mubr.f32.mxu0 0.0
    %204 = vmatmul.mubr.f32.gmra.mrb[0].mxu0 %v122
    %v205 = vpop.f32.mrb[0].mxu0
    %v206 = vadd.f32 0.0, %v205
    %v207 = vpop.f32.mrb[0].mxu0
    %208 = vdwg.mxu0
    %v209 = vxor.u32 %v206, 2147483648
    %v210 = vmul.f32 %v209, 1.442695
    %v211 = vpow.pop %v210
    %v212 = vadd.f32 %v211, 1.0
    %v213 = vrcp.pop %v212
    %v214 = vmul.f32 1.0, %v213
    %215 = vrot.lane.b32.xlu0 %v206, 96
    %v216 = vpop.permute.xlu0 %215
    %v217 = vxor.u32 %v216, 2147483648
    %v218 = vmul.f32 %v217, 1.442695
    %v219 = vpow.pop %v218
    %v220 = vadd.f32 %v219, 1.0
    %v221 = vrcp.pop %v220
    %v222 = vmul.f32 1.0, %v221
    %223 = vrot.lane.b32.xlu0 %v206, 64
    %v224 = vpop.permute.xlu0 %223
    %v225 = vtanh.pop %v224
    %226 = vrot.lane.b32.xlu0 %v206, 32
    %v227 = vpop.permute.xlu0 %226
    %v228 = vxor.u32 %v227, 2147483648
    %v229 = vmul.f32 %v228, 1.442695
    %v230 = vpow.pop %v229
    %v231 = vadd.f32 %v230, 1.0
    %v232 = vrcp.pop %v231
    %v233 = vmul.f32 1.0, %v232
    %v234 = vmul.f32 %v222, 0.0
    %v235 = vmul.f32 %v214, %v225
    %v236 = vadd.f32 %v234, %v235
    %v237 = vtanh.pop %v236
    %v238 = vmul.f32 %v233, %v237
    %v239 = vld [vmem:[#allocation9] sm:$0xff]
    %v240 = vld [vmem:[#allocation9 + $0x8] sm:$0xff]
    %v241 = vld [vmem:[#allocation9 + $0x10] sm:$0xff]
    %v242 = vld [vmem:[#allocation9 + $0x18] sm:$0xff]
    %v243 = vld [vmem:[#allocation9 + $0x20] sm:$0xff]
    %v244 = vld [vmem:[#allocation9 + $0x28] sm:$0xff]
    %v245 = vld [vmem:[#allocation9 + $0x30] sm:$0xff]
    %v246 = vld [vmem:[#allocation9 + $0x38] sm:$0xff]
    %v247 = vld [vmem:[#allocation9 + $0x40] sm:$0xff]
    %v248 = vld [vmem:[#allocation9 + $0x48] sm:$0xff]
    %v249 = vld [vmem:[#allocation9 + $0x50] sm:$0xff]
    %v250 = vld [vmem:[#allocation9 + $0x58] sm:$0xff]
    %v251 = vld [vmem:[#allocation9 + $0x60] sm:$0xff]
    %v252 = vld [vmem:[#allocation9 + $0x68] sm:$0xff]
    %v253 = vld [vmem:[#allocation9 + $0x70] sm:$0xff]
    %v254 = vld [vmem:[#allocation9 + $0x78] sm:$0xff]
    %255 = vmatprep.subr.mxu0 0.0
    %256 = vmatpush1.msra.mxu0 %v239
    %257 = vmatprep.subr.mxu0 0.0
    %258 = vmatpush1.msra.mxu0 %v240
    %259 = vmatprep.subr.mxu0 0.0
    %260 = vmatpush1.msra.mxu0 %v241
    %261 = vmatprep.subr.mxu0 0.0
    %262 = vmatpush1.msra.mxu0 %v242
    %263 = vmatprep.subr.mxu0 0.0
    %264 = vmatpush1.msra.mxu0 %v243
    %265 = vmatprep.subr.mxu0 0.0
    %266 = vmatpush1.msra.mxu0 %v244
    %267 = vmatprep.subr.mxu0 0.0
    %268 = vmatpush1.msra.mxu0 %v245
    %269 = vmatprep.subr.mxu0 0.0
    %270 = vmatpush1.msra.mxu0 %v246
    %271 = vmatprep.subr.mxu0 0.0
    %272 = vmatpush1.msra.mxu0 %v247
    %273 = vmatprep.subr.mxu0 0.0
    %274 = vmatpush1.msra.mxu0 %v248
    %275 = vmatprep.subr.mxu0 0.0
    %276 = vmatpush1.msra.mxu0 %v249
    %277 = vmatprep.subr.mxu0 0.0
    %278 = vmatpush1.msra.mxu0 %v250
    %279 = vmatprep.subr.mxu0 0.0
    %280 = vmatpush1.msra.mxu0 %v251
    %281 = vmatprep.subr.mxu0 0.0
    %282 = vmatpush1.msra.mxu0 %v252
    %283 = vmatprep.subr.mxu0 0.0
    %284 = vmatpush1.msra.mxu0 %v253
    %285 = vmatprep.subr.mxu0 0.0
    %286 = vmatpush1.msra.mxu0 %v254
    %287 = vmatprep.subr.mxu0 0.0
    %288 = vmatpush1.msra.mxu0 0.0
    %289 = vmatprep.subr.mxu0 0.0
    %290 = vmatpush1.msra.mxu0 0.0
    %291 = vmatprep.subr.mxu0 0.0
    %292 = vmatpush1.msra.mxu0 0.0
    %293 = vmatprep.subr.mxu0 0.0
    %294 = vmatpush1.msra.mxu0 0.0
    %295 = vmatprep.subr.mxu0 0.0
    %296 = vmatpush1.msra.mxu0 0.0
    %297 = vmatprep.subr.mxu0 0.0
    %298 = vmatpush1.msra.mxu0 0.0
    %299 = vmatprep.subr.mxu0 0.0
    %300 = vmatpush1.msra.mxu0 0.0
    %301 = vmatprep.subr.mxu0 0.0
    %302 = vmatpush1.msra.mxu0 0.0
    %303 = vmatprep.subr.mxu0 0.0
    %304 = vmatpush1.msra.mxu0 0.0
    %305 = vmatprep.subr.mxu0 0.0
    %306 = vmatpush1.msra.mxu0 0.0
    %307 = vmatprep.subr.mxu0 0.0
    %308 = vmatpush1.msra.mxu0 0.0
    %309 = vmatprep.subr.mxu0 0.0
    %310 = vmatpush1.msra.mxu0 0.0
    %311 = vmatprep.subr.mxu0 0.0
    %312 = vmatpush1.msra.mxu0 0.0
    %313 = vmatprep.subr.mxu0 0.0
    %314 = vmatpush1.msra.mxu0 0.0
    %315 = vmatprep.subr.mxu0 0.0
    %316 = vmatpush1.msra.mxu0 0.0
    %317 = vmatprep.subr.mxu0 0.0
    %318 = vmatpush1.msra.mxu0 0.0
    %319 = vmatprep.mubr.f32.mxu0 0.0
    %320 = vmatmul.mubr.f32.gmra.mrb[0].mxu0 %v238
    %v321 = vpop.f32.mrb[0].mxu0
    %v322 = vadd.f32 0.0, %v321
    %v323 = vpop.f32.mrb[0].mxu0
    %324 = vdwg.mxu0
    %v325 = vxor.u32 %v322, 2147483648
    %v326 = vmul.f32 %v325, 1.442695
    %v327 = vpow.pop %v326
    %v328 = vadd.f32 %v327, 1.0
    %v329 = vrcp.pop %v328
    %v330 = vmul.f32 1.0, %v329
    %331 = vrot.lane.b32.xlu0 %v322, 96
    %v332 = vpop.permute.xlu0 %331
    %v333 = vxor.u32 %v332, 2147483648
    %v334 = vmul.f32 %v333, 1.442695
    %v335 = vpow.pop %v334
    %v336 = vadd.f32 %v335, 1.0
    %v337 = vrcp.pop %v336
    %v338 = vmul.f32 1.0, %v337
    %339 = vrot.lane.b32.xlu0 %v322, 64
    %v340 = vpop.permute.xlu0 %339
    %v341 = vtanh.pop %v340
    %342 = vrot.lane.b32.xlu0 %v322, 32
    %v343 = vpop.permute.xlu0 %342
    %v344 = vxor.u32 %v343, 2147483648
    %v345 = vmul.f32 %v344, 1.442695
    %v346 = vpow.pop %v345
    %v347 = vadd.f32 %v346, 1.0
    %v348 = vrcp.pop %v347
    %v349 = vmul.f32 1.0, %v348
    %v350 = vmul.f32 %v338, 0.0
    %v351 = vmul.f32 %v330, %v341
    %v352 = vadd.f32 %v350, %v351
    %v353 = vtanh.pop %v352
    %v354 = vmul.f32 %v349, %v353
    loop: start=0, step=1, limit=8
    $region58: #{_device_forward.1} parent=1 // loop_pre_header
      _
    $region59: #{_device_forward.1} parent=1 // loop_header
      %s356 = sphi 0, %s360
      %p357 = scmp.ge.s32.totalorder %s356, 8
      %v361 = vphi %v238, %v586
      %v362 = vphi %v354, %v718
      %v363 = vphi %v236, %v584
      %v364 = vphi %v352, %v716
      %v365 = vphi 0, %v826
    $region60: #{_device_forward.1} parent=1 // loop_header_branch
      %359 = sbr.rel (%p357) target = $region64
    $region61: #{_device_forward.1} parent=1 // loop_body
      %vm366 = vcmp.eq.s32.totalorder %v120, %v365
      %v367 = vsel %vm366, 1, 0
      %v368 = vcvt.s32.f32 %v367
      %v369 = vld [vmem:[#allocation4] sm:$0xff]
      %v370 = vld [vmem:[#allocation4 + $0x8] sm:$0xff]
      %v371 = vld [vmem:[#allocation4 + $0x10] sm:$0xff]
      %v372 = vld [vmem:[#allocation4 + $0x18] sm:$0xff]
      %v373 = vld [vmem:[#allocation4 + $0x20] sm:$0xff]
      %v374 = vld [vmem:[#allocation4 + $0x28] sm:$0xff]
      %v375 = vld [vmem:[#allocation4 + $0x30] sm:$0xff]
      %v376 = vld [vmem:[#allocation4 + $0x38] sm:$0xff]
      %v377 = vld [vmem:[#allocation4 + $0x40] sm:$0xff]
      %v378 = vld [vmem:[#allocation4 + $0x48] sm:$0xff]
      %v379 = vld [vmem:[#allocation4 + $0x50] sm:$0xff]
      %v380 = vld [vmem:[#allocation4 + $0x58] sm:$0xff]
      %v381 = vld [vmem:[#allocation4 + $0x60] sm:$0xff]
      %v382 = vld [vmem:[#allocation4 + $0x68] sm:$0xff]
      %v383 = vld [vmem:[#allocation4 + $0x70] sm:$0xff]
      %v384 = vld [vmem:[#allocation4 + $0x78] sm:$0xff]
      %385 = vmatprep.subr.mxu0 0.0
      %386 = vmatpush1.msra.mxu0 %v369
      %387 = vmatprep.subr.mxu0 0.0
      %388 = vmatpush1.msra.mxu0 %v370
      %389 = vmatprep.subr.mxu0 0.0
      %390 = vmatpush1.msra.mxu0 %v371
      %391 = vmatprep.subr.mxu0 0.0
      %392 = vmatpush1.msra.mxu0 %v372
      %393 = vmatprep.subr.mxu0 0.0
      %394 = vmatpush1.msra.mxu0 %v373
      %395 = vmatprep.subr.mxu0 0.0
      %396 = vmatpush1.msra.mxu0 %v374
      %397 = vmatprep.subr.mxu0 0.0
      %398 = vmatpush1.msra.mxu0 %v375
      %399 = vmatprep.subr.mxu0 0.0
      %400 = vmatpush1.msra.mxu0 %v376
      %401 = vmatprep.subr.mxu0 0.0
      %402 = vmatpush1.msra.mxu0 %v377
      %403 = vmatprep.subr.mxu0 0.0
      %404 = vmatpush1.msra.mxu0 %v378
      %405 = vmatprep.subr.mxu0 0.0
      %406 = vmatpush1.msra.mxu0 %v379
      %407 = vmatprep.subr.mxu0 0.0
      %408 = vmatpush1.msra.mxu0 %v380
      %409 = vmatprep.subr.mxu0 0.0
      %410 = vmatpush1.msra.mxu0 %v381
      %411 = vmatprep.subr.mxu0 0.0
      %412 = vmatpush1.msra.mxu0 %v382
      %413 = vmatprep.subr.mxu0 0.0
      %414 = vmatpush1.msra.mxu0 %v383
      %415 = vmatprep.subr.mxu0 0.0
      %416 = vmatpush1.msra.mxu0 %v384
      %417 = vmatprep.subr.mxu0 0.0
      %418 = vmatpush1.msra.mxu0 0.0
      %419 = vmatprep.subr.mxu0 0.0
      %420 = vmatpush1.msra.mxu0 0.0
      %421 = vmatprep.subr.mxu0 0.0
      %422 = vmatpush1.msra.mxu0 0.0
      %423 = vmatprep.subr.mxu0 0.0
      %424 = vmatpush1.msra.mxu0 0.0
      %425 = vmatprep.subr.mxu0 0.0
      %426 = vmatpush1.msra.mxu0 0.0
      %427 = vmatprep.subr.mxu0 0.0
      %428 = vmatpush1.msra.mxu0 0.0
      %429 = vmatprep.subr.mxu0 0.0
      %430 = vmatpush1.msra.mxu0 0.0
      %431 = vmatprep.subr.mxu0 0.0
      %432 = vmatpush1.msra.mxu0 0.0
      %433 = vmatprep.subr.mxu0 0.0
      %434 = vmatpush1.msra.mxu0 0.0
      %435 = vmatprep.subr.mxu0 0.0
      %436 = vmatpush1.msra.mxu0 0.0
      %437 = vmatprep.subr.mxu0 0.0
      %438 = vmatpush1.msra.mxu0 0.0
      %439 = vmatprep.subr.mxu0 0.0
      %440 = vmatpush1.msra.mxu0 0.0
      %441 = vmatprep.subr.mxu0 0.0
      %442 = vmatpush1.msra.mxu0 0.0
      %443 = vmatprep.subr.mxu0 0.0
      %444 = vmatpush1.msra.mxu0 0.0
      %445 = vmatprep.subr.mxu0 0.0
      %446 = vmatpush1.msra.mxu0 0.0
      %447 = vmatprep.subr.mxu0 0.0
      %448 = vmatpush1.msra.mxu0 0.0
      %449 = vmatprep.mubr.f32.mxu0 0.0
      %450 = vmatmul.mubr.f32.gmra.mrb[0].mxu0 %v368
      %v451 = vpop.f32.mrb[0].mxu0
      %v452 = vadd.f32 0.0, %v451
      %v453 = vpop.f32.mrb[0].mxu0
      %454 = vdwg.mxu0
      %v455 = vld [vmem:[#allocation10] sm:$0xff]
      %v456 = vld [vmem:[#allocation10 + $0x8] sm:$0xff]
      %v457 = vld [vmem:[#allocation10 + $0x10] sm:$0xff]
      %v458 = vld [vmem:[#allocation10 + $0x18] sm:$0xff]
      %v459 = vld [vmem:[#allocation10 + $0x20] sm:$0xff]
      %v460 = vld [vmem:[#allocation10 + $0x28] sm:$0xff]
      %v461 = vld [vmem:[#allocation10 + $0x30] sm:$0xff]
      %v462 = vld [vmem:[#allocation10 + $0x38] sm:$0xff]
      %v463 = vld [vmem:[#allocation10 + $0x40] sm:$0xff]
      %v464 = vld [vmem:[#allocation10 + $0x48] sm:$0xff]
      %v465 = vld [vmem:[#allocation10 + $0x50] sm:$0xff]
      %v466 = vld [vmem:[#allocation10 + $0x58] sm:$0xff]
      %v467 = vld [vmem:[#allocation10 + $0x60] sm:$0xff]
      %v468 = vld [vmem:[#allocation10 + $0x68] sm:$0xff]
      %v469 = vld [vmem:[#allocation10 + $0x70] sm:$0xff]
      %v470 = vld [vmem:[#allocation10 + $0x78] sm:$0xff]
      %v471 = vld [vmem:[#allocation10 + $0x80] sm:$0xff]
      %v472 = vld [vmem:[#allocation10 + $0x88] sm:$0xff]
      %v473 = vld [vmem:[#allocation10 + $0x90] sm:$0xff]
      %v474 = vld [vmem:[#allocation10 + $0x98] sm:$0xff]
      %v475 = vld [vmem:[#allocation10 + $0xa0] sm:$0xff]
      %v476 = vld [vmem:[#allocation10 + $0xa8] sm:$0xff]
      %v477 = vld [vmem:[#allocation10 + $0xb0] sm:$0xff]
      %v478 = vld [vmem:[#allocation10 + $0xb8] sm:$0xff]
      %v479 = vld [vmem:[#allocation10 + $0xc0] sm:$0xff]
      %v480 = vld [vmem:[#allocation10 + $0xc8] sm:$0xff]
      %v481 = vld [vmem:[#allocation10 + $0xd0] sm:$0xff]
      %v482 = vld [vmem:[#allocation10 + $0xd8] sm:$0xff]
      %v483 = vld [vmem:[#allocation10 + $0xe0] sm:$0xff]
      %v484 = vld [vmem:[#allocation10 + $0xe8] sm:$0xff]
      %v485 = vld [vmem:[#allocation10 + $0xf0] sm:$0xff]
      %v486 = vld [vmem:[#allocation10 + $0xf8] sm:$0xff]
      %487 = vmatprep.subr.mxu0 0.0
      %488 = vmatpush1.msra.mxu0 %v455
      %489 = vmatprep.subr.mxu0 0.0
      %490 = vmatpush1.msra.mxu0 %v456
      %491 = vmatprep.subr.mxu0 0.0
      %492 = vmatpush1.msra.mxu0 %v457
      %493 = vmatprep.subr.mxu0 0.0
      %494 = vmatpush1.msra.mxu0 %v458
      %495 = vmatprep.subr.mxu0 0.0
      %496 = vmatpush1.msra.mxu0 %v459
      %497 = vmatprep.subr.mxu0 0.0
      %498 = vmatpush1.msra.mxu0 %v460
      %499 = vmatprep.subr.mxu0 0.0
      %500 = vmatpush1.msra.mxu0 %v461
      %501 = vmatprep.subr.mxu0 0.0
      %502 = vmatpush1.msra.mxu0 %v462
      %503 = vmatprep.subr.mxu0 0.0
      %504 = vmatpush1.msra.mxu0 %v463
      %505 = vmatprep.subr.mxu0 0.0
      %506 = vmatpush1.msra.mxu0 %v464
      %507 = vmatprep.subr.mxu0 0.0
      %508 = vmatpush1.msra.mxu0 %v465
      %509 = vmatprep.subr.mxu0 0.0
      %510 = vmatpush1.msra.mxu0 %v466
      %511 = vmatprep.subr.mxu0 0.0
      %512 = vmatpush1.msra.mxu0 %v467
      %513 = vmatprep.subr.mxu0 0.0
      %514 = vmatpush1.msra.mxu0 %v468
      %515 = vmatprep.subr.mxu0 0.0
      %516 = vmatpush1.msra.mxu0 %v469
      %517 = vmatprep.subr.mxu0 0.0
      %518 = vmatpush1.msra.mxu0 %v470
      %519 = vmatprep.subr.mxu0 0.0
      %520 = vmatpush1.msra.mxu0 %v471
      %521 = vmatprep.subr.mxu0 0.0
      %522 = vmatpush1.msra.mxu0 %v472
      %523 = vmatprep.subr.mxu0 0.0
      %524 = vmatpush1.msra.mxu0 %v473
      %525 = vmatprep.subr.mxu0 0.0
      %526 = vmatpush1.msra.mxu0 %v474
      %527 = vmatprep.subr.mxu0 0.0
      %528 = vmatpush1.msra.mxu0 %v475
      %529 = vmatprep.subr.mxu0 0.0
      %530 = vmatpush1.msra.mxu0 %v476
      %531 = vmatprep.subr.mxu0 0.0
      %532 = vmatpush1.msra.mxu0 %v477
      %533 = vmatprep.subr.mxu0 0.0
      %534 = vmatpush1.msra.mxu0 %v478
      %535 = vmatprep.subr.mxu0 0.0
      %536 = vmatpush1.msra.mxu0 %v479
      %537 = vmatprep.subr.mxu0 0.0
      %538 = vmatpush1.msra.mxu0 %v480
      %539 = vmatprep.subr.mxu0 0.0
      %540 = vmatpush1.msra.mxu0 %v481
      %541 = vmatprep.subr.mxu0 0.0
      %542 = vmatpush1.msra.mxu0 %v482
      %543 = vmatprep.subr.mxu0 0.0
      %544 = vmatpush1.msra.mxu0 %v483
      %545 = vmatprep.subr.mxu0 0.0
      %546 = vmatpush1.msra.mxu0 %v484
      %547 = vmatprep.subr.mxu0 0.0
      %548 = vmatpush1.msra.mxu0 %v485
      %549 = vmatprep.subr.mxu0 0.0
      %550 = vmatpush1.msra.mxu0 %v486
      %551 = vmatprep.mubr.f32.mxu0 %v361
      %552 = vmatmul.mubr.f32.gmra.mrb[0].mxu0 %v452
      %v553 = vpop.f32.mrb[0].mxu0
      %v554 = vadd.f32 0.0, %v553
      %v555 = vpop.f32.mrb[0].mxu0
      %556 = vdwg.mxu0
      %v557 = vxor.u32 %v554, 2147483648
      %v558 = vmul.f32 %v557, 1.442695
      %v559 = vpow.pop %v558
      %v560 = vadd.f32 %v559, 1.0
      %v561 = vrcp.pop %v560
      %v562 = vmul.f32 1.0, %v561
      %563 = vrot.lane.b32.xlu0 %v554, 96
      %v564 = vpop.permute.xlu0 %563
      %v565 = vxor.u32 %v564, 2147483648
      %v566 = vmul.f32 %v565, 1.442695
      %v567 = vpow.pop %v566
      %v568 = vadd.f32 %v567, 1.0
      %v569 = vrcp.pop %v568
      %v570 = vmul.f32 1.0, %v569
      %571 = vrot.lane.b32.xlu0 %v554, 64
      %v572 = vpop.permute.xlu0 %571
      %v573 = vtanh.pop %v572
      %574 = vrot.lane.b32.xlu0 %v554, 32
      %v575 = vpop.permute.xlu0 %574
      %v576 = vxor.u32 %v575, 2147483648
      %v577 = vmul.f32 %v576, 1.442695
      %v578 = vpow.pop %v577
      %v579 = vadd.f32 %v578, 1.0
      %v580 = vrcp.pop %v579
      %v581 = vmul.f32 1.0, %v580
      %v582 = vmul.f32 %v570, %v363
      %v583 = vmul.f32 %v562, %v573
      %v584 = vadd.f32 %v582, %v583
      %v585 = vtanh.pop %v584
      %v586 = vmul.f32 %v581, %v585
      %v587 = vld [vmem:[#allocation12] sm:$0xff]
      %v588 = vld [vmem:[#allocation12 + $0x8] sm:$0xff]
      %v589 = vld [vmem:[#allocation12 + $0x10] sm:$0xff]
      %v590 = vld [vmem:[#allocation12 + $0x18] sm:$0xff]
      %v591 = vld [vmem:[#allocation12 + $0x20] sm:$0xff]
      %v592 = vld [vmem:[#allocation12 + $0x28] sm:$0xff]
      %v593 = vld [vmem:[#allocation12 + $0x30] sm:$0xff]
      %v594 = vld [vmem:[#allocation12 + $0x38] sm:$0xff]
      %v595 = vld [vmem:[#allocation12 + $0x40] sm:$0xff]
      %v596 = vld [vmem:[#allocation12 + $0x48] sm:$0xff]
      %v597 = vld [vmem:[#allocation12 + $0x50] sm:$0xff]
      %v598 = vld [vmem:[#allocation12 + $0x58] sm:$0xff]
      %v599 = vld [vmem:[#allocation12 + $0x60] sm:$0xff]
      %v600 = vld [vmem:[#allocation12 + $0x68] sm:$0xff]
      %v601 = vld [vmem:[#allocation12 + $0x70] sm:$0xff]
      %v602 = vld [vmem:[#allocation12 + $0x78] sm:$0xff]
      %v603 = vld [vmem:[#allocation12 + $0x80] sm:$0xff]
      %v604 = vld [vmem:[#allocation12 + $0x88] sm:$0xff]
      %v605 = vld [vmem:[#allocation12 + $0x90] sm:$0xff]
      %v606 = vld [vmem:[#allocation12 + $0x98] sm:$0xff]
      %v607 = vld [vmem:[#allocation12 + $0xa0] sm:$0xff]
      %v608 = vld [vmem:[#allocation12 + $0xa8] sm:$0xff]
      %v609 = vld [vmem:[#allocation12 + $0xb0] sm:$0xff]
      %v610 = vld [vmem:[#allocation12 + $0xb8] sm:$0xff]
      %v611 = vld [vmem:[#allocation12 + $0xc0] sm:$0xff]
      %v612 = vld [vmem:[#allocation12 + $0xc8] sm:$0xff]
      %v613 = vld [vmem:[#allocation12 + $0xd0] sm:$0xff]
      %v614 = vld [vmem:[#allocation12 + $0xd8] sm:$0xff]
      %v615 = vld [vmem:[#allocation12 + $0xe0] sm:$0xff]
      %v616 = vld [vmem:[#allocation12 + $0xe8] sm:$0xff]
      %v617 = vld [vmem:[#allocation12 + $0xf0] sm:$0xff]
      %v618 = vld [vmem:[#allocation12 + $0xf8] sm:$0xff]
      %619 = vmatprep.subr.mxu0 0.0
      %620 = vmatpush1.msra.mxu0 %v587
      %621 = vmatprep.subr.mxu0 0.0
      %622 = vmatpush1.msra.mxu0 %v588
      %623 = vmatprep.subr.mxu0 0.0
      %624 = vmatpush1.msra.mxu0 %v589
      %625 = vmatprep.subr.mxu0 0.0
      %626 = vmatpush1.msra.mxu0 %v590
      %627 = vmatprep.subr.mxu0 0.0
      %628 = vmatpush1.msra.mxu0 %v591
      %629 = vmatprep.subr.mxu0 0.0
      %630 = vmatpush1.msra.mxu0 %v592
      %631 = vmatprep.subr.mxu0 0.0
      %632 = vmatpush1.msra.mxu0 %v593
      %633 = vmatprep.subr.mxu0 0.0
      %634 = vmatpush1.msra.mxu0 %v594
      %635 = vmatprep.subr.mxu0 0.0
      %636 = vmatpush1.msra.mxu0 %v595
      %637 = vmatprep.subr.mxu0 0.0
      %638 = vmatpush1.msra.mxu0 %v596
      %639 = vmatprep.subr.mxu0 0.0
      %640 = vmatpush1.msra.mxu0 %v597
      %641 = vmatprep.subr.mxu0 0.0
      %642 = vmatpush1.msra.mxu0 %v598
      %643 = vmatprep.subr.mxu0 0.0
      %644 = vmatpush1.msra.mxu0 %v599
      %645 = vmatprep.subr.mxu0 0.0
      %646 = vmatpush1.msra.mxu0 %v600
      %647 = vmatprep.subr.mxu0 0.0
      %648 = vmatpush1.msra.mxu0 %v601
      %649 = vmatprep.subr.mxu0 0.0
      %650 = vmatpush1.msra.mxu0 %v602
      %651 = vmatprep.subr.mxu0 0.0
      %652 = vmatpush1.msra.mxu0 %v603
      %653 = vmatprep.subr.mxu0 0.0
      %654 = vmatpush1.msra.mxu0 %v604
      %655 = vmatprep.subr.mxu0 0.0
      %656 = vmatpush1.msra.mxu0 %v605
      %657 = vmatprep.subr.mxu0 0.0
      %658 = vmatpush1.msra.mxu0 %v606
      %659 = vmatprep.subr.mxu0 0.0
      %660 = vmatpush1.msra.mxu0 %v607
      %661 = vmatprep.subr.mxu0 0.0
      %662 = vmatpush1.msra.mxu0 %v608
      %663 = vmatprep.subr.mxu0 0.0
      %664 = vmatpush1.msra.mxu0 %v609
      %665 = vmatprep.subr.mxu0 0.0
      %666 = vmatpush1.msra.mxu0 %v610
      %667 = vmatprep.subr.mxu0 0.0
      %668 = vmatpush1.msra.mxu0 %v611
      %669 = vmatprep.subr.mxu0 0.0
      %670 = vmatpush1.msra.mxu0 %v612
      %671 = vmatprep.subr.mxu0 0.0
      %672 = vmatpush1.msra.mxu0 %v613
      %673 = vmatprep.subr.mxu0 0.0
      %674 = vmatpush1.msra.mxu0 %v614
      %675 = vmatprep.subr.mxu0 0.0
      %676 = vmatpush1.msra.mxu0 %v615
      %677 = vmatprep.subr.mxu0 0.0
      %678 = vmatpush1.msra.mxu0 %v616
      %679 = vmatprep.subr.mxu0 0.0
      %680 = vmatpush1.msra.mxu0 %v617
      %681 = vmatprep.subr.mxu0 0.0
      %682 = vmatpush1.msra.mxu0 %v618
      %683 = vmatprep.mubr.f32.mxu0 %v362
      %684 = vmatmul.mubr.f32.gmra.mrb[0].mxu0 %v586
      %v685 = vpop.f32.mrb[0].mxu0
      %v686 = vadd.f32 0.0, %v685
      %v687 = vpop.f32.mrb[0].mxu0
      %688 = vdwg.mxu0
      %v689 = vxor.u32 %v686, 2147483648
      %v690 = vmul.f32 %v689, 1.442695
      %v691 = vpow.pop %v690
      %v692 = vadd.f32 %v691, 1.0
      %v693 = vrcp.pop %v692
      %v694 = vmul.f32 1.0, %v693
      %695 = vrot.lane.b32.xlu0 %v686, 96
      %v696 = vpop.permute.xlu0 %695
      %v697 = vxor.u32 %v696, 2147483648
      %v698 = vmul.f32 %v697, 1.442695
      %v699 = vpow.pop %v698
      %v700 = vadd.f32 %v699, 1.0
      %v701 = vrcp.pop %v700
      %v702 = vmul.f32 1.0, %v701
      %703 = vrot.lane.b32.xlu0 %v686, 64
      %v704 = vpop.permute.xlu0 %703
      %v705 = vtanh.pop %v704
      %706 = vrot.lane.b32.xlu0 %v686, 32
      %v707 = vpop.permute.xlu0 %706
      %v708 = vxor.u32 %v707, 2147483648
      %v709 = vmul.f32 %v708, 1.442695
      %v710 = vpow.pop %v709
      %v711 = vadd.f32 %v710, 1.0
      %v712 = vrcp.pop %v711
      %v713 = vmul.f32 1.0, %v712
      %v714 = vmul.f32 %v702, %v364
      %v715 = vmul.f32 %v694, %v705
      %v716 = vadd.f32 %v714, %v715
      %v717 = vtanh.pop %v716
      %v718 = vmul.f32 %v713, %v717
      %v719 = vld [vmem:[#allocation6] sm:$0xff]
      %v720 = vld [vmem:[#allocation6 + $0x8] sm:$0xff]
      %v721 = vld [vmem:[#allocation6 + $0x10] sm:$0xff]
      %v722 = vld [vmem:[#allocation6 + $0x18] sm:$0xff]
      %v723 = vld [vmem:[#allocation6 + $0x20] sm:$0xff]
      %v724 = vld [vmem:[#allocation6 + $0x28] sm:$0xff]
      %v725 = vld [vmem:[#allocation6 + $0x30] sm:$0xff]
      %v726 = vld [vmem:[#allocation6 + $0x38] sm:$0xff]
      %v727 = vld [vmem:[#allocation6 + $0x40] sm:$0xff]
      %v728 = vld [vmem:[#allocation6 + $0x48] sm:$0xff]
      %v729 = vld [vmem:[#allocation6 + $0x50] sm:$0xff]
      %v730 = vld [vmem:[#allocation6 + $0x58] sm:$0xff]
      %v731 = vld [vmem:[#allocation6 + $0x60] sm:$0xff]
      %v732 = vld [vmem:[#allocation6 + $0x68] sm:$0xff]
      %v733 = vld [vmem:[#allocation6 + $0x70] sm:$0xff]
      %v734 = vld [vmem:[#allocation6 + $0x78] sm:$0xff]
      %735 = vmatprep.subr.mxu0 0.0
      %736 = vmatpush1.msra.mxu0 %v719
      %737 = vmatprep.subr.mxu0 0.0
      %738 = vmatpush1.msra.mxu0 %v720
      %739 = vmatprep.subr.mxu0 0.0
      %740 = vmatpush1.msra.mxu0 %v721
      %741 = vmatprep.subr.mxu0 0.0
      %742 = vmatpush1.msra.mxu0 %v722
      %743 = vmatprep.subr.mxu0 0.0
      %744 = vmatpush1.msra.mxu0 %v723
      %745 = vmatprep.subr.mxu0 0.0
      %746 = vmatpush1.msra.mxu0 %v724
      %747 = vmatprep.subr.mxu0 0.0
      %748 = vmatpush1.msra.mxu0 %v725
      %749 = vmatprep.subr.mxu0 0.0
      %750 = vmatpush1.msra.mxu0 %v726
      %751 = vmatprep.subr.mxu0 0.0
      %752 = vmatpush1.msra.mxu0 %v727
      %753 = vmatprep.subr.mxu0 0.0
      %754 = vmatpush1.msra.mxu0 %v728
      %755 = vmatprep.subr.mxu0 0.0
      %756 = vmatpush1.msra.mxu0 %v729
      %757 = vmatprep.subr.mxu0 0.0
      %758 = vmatpush1.msra.mxu0 %v730
      %759 = vmatprep.subr.mxu0 0.0
      %760 = vmatpush1.msra.mxu0 %v731
      %761 = vmatprep.subr.mxu0 0.0
      %762 = vmatpush1.msra.mxu0 %v732
      %763 = vmatprep.subr.mxu0 0.0
      %764 = vmatpush1.msra.mxu0 %v733
      %765 = vmatprep.subr.mxu0 0.0
      %766 = vmatpush1.msra.mxu0 %v734
      %767 = vmatprep.subr.mxu0 0.0
      %768 = vmatpush1.msra.mxu0 0.0
      %769 = vmatprep.subr.mxu0 0.0
      %770 = vmatpush1.msra.mxu0 0.0
      %771 = vmatprep.subr.mxu0 0.0
      %772 = vmatpush1.msra.mxu0 0.0
      %773 = vmatprep.subr.mxu0 0.0
      %774 = vmatpush1.msra.mxu0 0.0
      %775 = vmatprep.subr.mxu0 0.0
      %776 = vmatpush1.msra.mxu0 0.0
      %777 = vmatprep.subr.mxu0 0.0
      %778 = vmatpush1.msra.mxu0 0.0
      %779 = vmatprep.subr.mxu0 0.0
      %780 = vmatpush1.msra.mxu0 0.0
      %781 = vmatprep.subr.mxu0 0.0
      %782 = vmatpush1.msra.mxu0 0.0
      %783 = vmatprep.subr.mxu0 0.0
      %784 = vmatpush1.msra.mxu0 0.0
      %785 = vmatprep.subr.mxu0 0.0
      %786 = vmatpush1.msra.mxu0 0.0
      %787 = vmatprep.subr.mxu0 0.0
      %788 = vmatpush1.msra.mxu0 0.0
      %789 = vmatprep.subr.mxu0 0.0
      %790 = vmatpush1.msra.mxu0 0.0
      %791 = vmatprep.subr.mxu0 0.0
      %792 = vmatpush1.msra.mxu0 0.0
      %793 = vmatprep.subr.mxu0 0.0
      %794 = vmatpush1.msra.mxu0 0.0
      %795 = vmatprep.subr.mxu0 0.0
      %796 = vmatpush1.msra.mxu0 0.0
      %797 = vmatprep.subr.mxu0 0.0
      %798 = vmatpush1.msra.mxu0 0.0
      %799 = vmatprep.mubr.f32.mxu0 0.0
      %800 = vmatmul.mubr.f32.gmra.mrb[0].mxu0 %v718
      %v801 = vpop.f32.mrb[0].mxu0
      %v802 = vadd.f32 0.0, %v801
      %v803 = vpop.f32.mrb[0].mxu0
      %804 = vdwg.mxu0
      %v805 = vsel %vm121, %v802, -1e+30
      %vm806 = vcmask 1041408
      %v807 = vsel %vm806, %v805, -inf
      %808 = vmax.xlane.f32.xlu0 %v807
      %v809 = vpop.xlane.xlu0 %808
      %vm810 = vcmp.eq.f32.partialorder %v805, %v809
      %v811 = vsel %vm810, %v120, 128
      %v812 = vsel %vm806, %v811, 2147483647
      %v813 = vand.u32 %v812, 65535
      %v814 = vshra.s32 %v812, 16
      %v815 = vcvt.s32.f32 %v813
      %v816 = vcvt.s32.f32 %v814
      %817 = vmin.xlane.f32.xlu0 %v816
      %v818 = vpop.xlane.xlu0 %817
      %vm819 = vcmp.eq.f32.partialorder %v816, %v818
      %v820 = vsel %vm819, %v815, inf
      %821 = vmin.xlane.f32.xlu0 %v820
      %v822 = vpop.xlane.xlu0 %821
      %v823 = vcvt.f32.s32 %v822
      %v824 = vcvt.f32.s32 %v818
      %v825 = vshll.u32 %v824, 16
      %v826 = vadd.s32 %v825, %v823
      %s827 = smul.u32 %s356, 2
      %s828 = scalar_lea.vmem %s7, %s827
      %vm829 = vcmask 1024
      %830 = vst.msk [vmem:[%s828] sm:$0x3] %vm829, %v826
    $region62: #{_device_forward.1} parent=1 // loop_footer
      %s360 = sadd.s32 1, %s356
    $region63: #{_device_forward.1} parent=1 // loop_footer_branch
      %355 = sbr.rel target = $region59
    $region64: #{_device_forward.1} parent=1 // loop_exit
      _
    // Predicated region
    $region65: #{_device_forward.1} parent=1 // pred_check
      _
    $region66: #{_device_forward.1} parent=1 // pred_check_branch
      %832 = sbr.rel (0) target = $region68
    $region67: #{_device_forward.1} parent=1 // pred_region
      _
    $region68: #{_device_forward.1} parent=1 // pred_fallthru
      _
    // Predicated region
    $region69: #{_device_forward.1} parent=1 // pred_check
      _
    $region70: #{_device_forward.1} parent=1 // pred_check_branch
      %834 = sbr.rel (0) target = $region72
    $region71: #{_device_forward.1} parent=1 // pred_region
      _
    $region72: #{_device_forward.1} parent=1 // pred_fallthru
      _
    %835 = vsyncpa [#allocation3], 1
    %836 = vsyncpa [#allocation5], 1
    %837 = vsyncpa [#allocation8], 1
    %838 = vsyncpa [#allocation11], 1

</llo_original>
